<compile_context>
chip_gen: v6e
topology: v6e:2x2x1
jax: 0.10.0
libtpu: 0.0.40
codegen_flags: <defaults>
</compile_context>

<pallas_src>
import functools
import math

import jax
import jax.numpy as jnp
from jax import lax
from jax.experimental import pallas as pl
from jax.experimental.pallas import tpu as pltpu


# ---------------------------------------------------------------------------
# Pallas kernel: Conv3d(kernel_size=1)  ==  per-voxel channel mix (MXU dot)
# ---------------------------------------------------------------------------
def _pointwise_conv_kernel(w_ref, b_ref, x_ref, o_ref):
    """o[0] = W @ x[0] + b   with f32 accumulation on the MXU.

    w_ref: VMEM (cout, cin)   b_ref: VMEM (cout, 1) f32
    x_ref: VMEM (1, cin, TS)  o_ref: VMEM (1, cout, TS)   (spatial on lanes)
    """
    x = x_ref[0]                                   # (cin, TS)
    acc = jnp.dot(w_ref[...], x, preferred_element_type=jnp.float32)  # (cout, TS)
    o_ref[0] = (acc + b_ref[...]).astype(o_ref.dtype)


def _round_up(x, m):
    return (x + m - 1) // m * m


@functools.partial(jax.jit, static_argnames=("ts",))
def pointwise_conv3d(x, weight, bias, *, ts=32768):
    """nn.Conv3d(kernel_size=1): x (N,Cin,D,H,W), weight (Cout,Cin,1,1,1), bias (Cout,)."""
    n, cin, d, h, w = x.shape
    cout = weight.shape[0]
    s = d * h * w

    x3 = x.reshape(n, cin, s)                      # free reshape — no transpose, no pad

    # Lane tile: multiple of 128, capped by the (rounded-up) spatial size.
    ts = min(ts, _round_up(s, 128))
    # Keep a few spatial tiles so both v7x TensorCores stream and DMA overlaps
    # compute; harmless on v5e/v6e.
    min_tiles = 4
    if pl.cdiv(s, ts) < min_tiles and s > min_tiles * 128:
        ts = _round_up(pl.cdiv(s, min_tiles), 128)
    num_s_tiles = pl.cdiv(s, ts)                   # ragged last block: masked writes

    w2d = weight.reshape(cout, cin).astype(x.dtype)          # tiny VMEM tile
    b2d = bias.reshape(cout, 1).astype(jnp.float32)

    out3 = pl.pallas_call(
        _pointwise_conv_kernel,
        out_shape=jax.ShapeDtypeStruct((n, cout, s), x.dtype),
        grid_spec=pltpu.PrefetchScalarGridSpec(
            num_scalar_prefetch=0,
            grid=(n, num_s_tiles),
            in_specs=[
                pl.BlockSpec((cout, cin), lambda i, j: (0, 0)),       # weights
                pl.BlockSpec((cout, 1), lambda i, j: (0, 0)),         # bias
                pl.BlockSpec((1, cin, ts), lambda i, j: (i, 0, j)),   # x slab
            ],
            out_specs=pl.BlockSpec((1, cout, ts), lambda i, j: (i, 0, j)),
        ),
        compiler_params=pltpu.CompilerParams(
            dimension_semantics=("parallel", "parallel")),
    )(w2d, b2d, x3)

    return out3.reshape(n, cout, d, h, w)


# ---------------------------------------------------------------------------
# MeshNet forward (conv blocks via XLA, head via the Pallas kernel above)
# ---------------------------------------------------------------------------
# (padding, dilation) for the seven k=3 blocks of the small (38/64) MeshNet.
_MESHNET_SMALL_BLOCKS = [(1, 1), (1, 1), (1, 1), (2, 2), (4, 4), (8, 8), (1, 1)]


def init_meshnet_params(key, n_channels, n_classes, width=21):
    """Xavier-normal (relu gain) conv weights, zero bias, fresh BN stats."""
    blocks = []
    cin = n_channels
    for (pad, dil) in _MESHNET_SMALL_BLOCKS:
        key, kw = jax.random.split(key)
        fan_in, fan_out = cin * 27, width * 27
        std = math.sqrt(2.0) * math.sqrt(2.0 / (fan_in + fan_out))
        blocks.append(dict(
            w=std * jax.random.normal(kw, (width, cin, 3, 3, 3), jnp.float32),
            b=jnp.zeros((width,), jnp.float32),
            gamma=jnp.ones((width,), jnp.float32),
            beta=jnp.zeros((width,), jnp.float32),
            mean=jnp.zeros((width,), jnp.float32),
            var=jnp.ones((width,), jnp.float32),
            padding=pad, dilation=dil))
        cin = width
    key, kw = jax.random.split(key)
    std = math.sqrt(2.0) * math.sqrt(2.0 / (cin + n_classes))
    w_out = std * jax.random.normal(kw, (n_classes, cin, 1, 1, 1), jnp.float32)
    b_out = jnp.zeros((n_classes,), jnp.float32)
    return blocks, (w_out, b_out)


def _conv_bn_relu_block(x, p, eps=1e-5):
    # Eval-mode BatchNorm folded into the conv weight/bias; Dropout3d(p=0) == id.
    scale = p["gamma"] / jnp.sqrt(p["var"] + eps)
    w = p["w"] * scale[:, None, None, None, None]
    b = (p["b"] - p["mean"]) * scale + p["beta"]
    # TODO(synk): dilated 3x3x3 conv left to XLA (dominant cost; future Pallas kernel).
    y = lax.conv_general_dilated(
        x, w, window_strides=(1, 1, 1),
        padding=[(p["padding"], p["padding"])] * 3,
        rhs_dilation=(p["dilation"],) * 3,
        dimension_numbers=("NCDHW", "OIDHW", "NCDHW"))
    y = y + b[None, :, None, None, None]
    return jnp.maximum(y, 0.0)


def meshnet_forward(x, block_params, out_params, *, use_pallas_head=True):
    for p in block_params:
        x = _conv_bn_relu_block(x, p)
    w_out, b_out = out_params
    if use_pallas_head:
        return pointwise_conv3d(x, w_out, b_out)
    # pure-JAX reference head (for validation only)
    w2d = w_out.reshape(w_out.shape[0], w_out.shape[1])
    return jnp.einsum("ncdhw,oc->nodhw", x, w2d) + b_out[None, :, None, None, None]


# ---------------------------------------------------------------------------
if __name__ == "__main__":
    key = jax.random.PRNGKey(0)
    k_params, k_x, k_x2, k_w2, k_b2 = jax.random.split(key, 5)

    # Small MeshNet: n_channels=1, n_classes=3, 21-wide hidden blocks.
    n_channels, n_classes = 1, 3
    N, D, H, W = 1, 16, 16, 16
    block_params, out_params = init_meshnet_params(
        k_params, n_channels, n_classes, width=21)
    x = jax.random.normal(k_x, (N, n_channels, D, H, W), jnp.float32)

    out = meshnet_forward(x, block_params, out_params, use_pallas_head=True)
    out = jax.block_until_ready(out)
    ref = meshnet_forward(x, block_params, out_params, use_pallas_head=False)
    assert out.shape == (N, n_classes, D, H, W)
    assert jnp.allclose(out, ref, atol=1e-4, rtol=1e-4)

    # Standalone check of the Pallas 1x1x1-conv kernel with a different batch
    # and a non-128-divisible spatial size (exercises the masked ragged block).
    x2 = jax.random.normal(k_x2, (2, 21, 7, 9, 11), jnp.float32)
    w2 = 0.1 * jax.random.normal(k_w2, (3, 21, 1, 1, 1), jnp.float32)
    b2 = 0.1 * jax.random.normal(k_b2, (3,), jnp.float32)
    got = jax.block_until_ready(pointwise_conv3d(x2, w2, b2))
    want = (jnp.einsum("ncdhw,oc->nodhw", x2, w2.reshape(3, 21))
            + b2[None, :, None, None, None])
    assert jnp.allclose(got, want, atol=1e-5, rtol=1e-5)

    # bf16 streaming path (HBM-bound head: half the bytes, f32 accumulation).
    x2_bf = x2.astype(jnp.bfloat16)
    w2_bf = w2.astype(jnp.bfloat16)
    got_bf = jax.block_until_ready(pointwise_conv3d(x2_bf, w2_bf, b2))
    want_bf = (jnp.einsum("ncdhw,oc->nodhw",
                          x2_bf.astype(jnp.float32),
                          w2_bf.reshape(3, 21).astype(jnp.float32))
               + b2[None, :, None, None, None])
    assert got_bf.dtype == jnp.bfloat16
    assert jnp.allclose(got_bf.astype(jnp.float32), want_bf, atol=3e-2, rtol=3e-2)

    print("KERNEL_OK")
</pallas_src>

<mosaic_0001>
module attributes {stable_mosaic.version = 11 : i64} {
  func.func @_pointwise_conv_kernel(%arg0: i32, %arg1: i32, %arg2: memref<3x21xf32, #tpu.memory_space<vmem>>, %arg3: memref<3x1xf32, #tpu.memory_space<vmem>>, %arg4: memref<1x21x1024xf32, #tpu.memory_space<vmem>>, %arg5: memref<1x3x1024xf32, #tpu.memory_space<vmem>>) attributes {dimension_semantics = [#tpu.dimension_semantics<parallel>, #tpu.dimension_semantics<parallel>], iteration_bounds = array<i64: 1, 4>, scalar_prefetch = 0 : i64, scratch_operands = 0 : i64, tpu.core_type = #tpu.core_type<tc>, window_params = [{pipeline_mode = #tpu.pipeline_mode<synchronous>, transform_indices = @transform_0, window_bounds = array<i64: 3, 21>}, {pipeline_mode = #tpu.pipeline_mode<synchronous>, transform_indices = @transform_1, window_bounds = array<i64: 3, 1>}, {transform_indices = @transform_2, window_bounds = array<i64: 1, 21, 1024>}, {transform_indices = @transform_3, window_bounds = array<i64: 1, 3, 1024>}]} {
    %c0 = arith.constant 0 : index
    %c0_0 = arith.constant 0 : index
    %c0_1 = arith.constant 0 : index
    %0 = vector.load %arg4[%c0, %c0_0, %c0_1] : memref<1x21x1024xf32, #tpu.memory_space<vmem>>, vector<1x21x1024xf32>
    %1 = vector.shape_cast %0 : vector<1x21x1024xf32> to vector<21x1024xf32>
    %c0_2 = arith.constant 0 : index
    %c0_3 = arith.constant 0 : index
    %2 = vector.load %arg2[%c0_2, %c0_3] : memref<3x21xf32, #tpu.memory_space<vmem>>, vector<3x21xf32>
    %cst = arith.constant dense<0.000000e+00> : vector<3x1024xf32>
    %3 = tpu.matmul %2, %1, %cst {dimension_numbers = #tpu.dot_dimension_numbers<[1], [0], [0], [1], [0, 0, 1, 1], [], []>} : vector<3x21xf32>, vector<21x1024xf32>, vector<3x1024xf32> -> vector<3x1024xf32>
    %c0_4 = arith.constant 0 : index
    %c0_5 = arith.constant 0 : index
    %4 = vector.load %arg3[%c0_4, %c0_5] : memref<3x1xf32, #tpu.memory_space<vmem>>, vector<3x1xf32>
    %5 = vector.broadcast %4 : vector<3x1xf32> to vector<3x1024xf32>
    %6 = arith.addf %3, %5 : vector<3x1024xf32>
    %c0_6 = arith.constant 0 : index
    %c0_7 = arith.constant 0 : index
    %c0_8 = arith.constant 0 : index
    %7 = vector.load %arg5[%c0_6, %c0_7, %c0_8] : memref<1x3x1024xf32, #tpu.memory_space<vmem>>, vector<1x3x1024xf32>
    %8 = vector.shape_cast %7 : vector<1x3x1024xf32> to vector<3x1024xf32>
    %9 = vector.shape_cast %6 : vector<3x1024xf32> to vector<1x3x1024xf32>
    tpu.vector_store %arg5[%c0_6, %c0_7, %c0_8], %9 {strides = array<i32>} : memref<1x3x1024xf32, #tpu.memory_space<vmem>>, vector<1x3x1024xf32>,
    return
  }
  func.func @transform_0(%arg0: i32, %arg1: i32) -> (i32, i32) {
    %c0_i32 = arith.constant 0 : i32
    %c0_i32_0 = arith.constant 0 : i32
    %c0_i32_1 = arith.constant 0 : i32
    return %c0_i32, %c0_i32_0 : i32, i32
  }
  func.func @transform_1(%arg0: i32, %arg1: i32) -> (i32, i32) {
    %c0_i32 = arith.constant 0 : i32
    %c0_i32_0 = arith.constant 0 : i32
    %c0_i32_1 = arith.constant 0 : i32
    return %c0_i32, %c0_i32_0 : i32, i32
  }
  func.func @transform_2(%arg0: i32, %arg1: i32) -> (i32, i32, i32) {
    %c0_i32 = arith.constant 0 : i32
    %c0_i32_0 = arith.constant 0 : i32
    return %arg0, %c0_i32, %arg1 : i32, i32, i32
  }
  func.func @transform_3(%arg0: i32, %arg1: i32) -> (i32, i32, i32) {
    %c0_i32 = arith.constant 0 : i32
    %c0_i32_0 = arith.constant 0 : i32
    return %arg0, %c0_i32, %arg1 : i32, i32, i32
  }
}

</mosaic_0001>

<llo_original>
// kernel: pointwise_conv3d.1
$region0: #{pointwise_conv3d.1}
  #allocation0 [shape = 'u32[]', space=smem, size = 0x4, offset = 0x4, fixed_abs, tag = 'smem constant byte address 0x4 - core index']
  #allocation1 [shape = 'u32[144,128]{1,0:T(1,128)}', space=vmem, size = 0x12000, scoped, tag = 'internal scratch']
  %s0 = inlined_call_operand.vmem [shape: f32[3,21], index: 0, kind: input, shape index: {}]
  %s1 = inlined_call_operand.vmem [shape: f32[3,1], index: 1, kind: input, shape index: {}]
  %s2 = inlined_call_operand.vmem [shape: f32[1,21,4096], index: 2, kind: input, shape index: {}]
  %s3 = inlined_call_operand.vmem [shape: f32[1,3,4096], index: 3, kind: output, shape index: {}]
  %s4 = sld [smem:[#allocation0]]
  $region68: #{pointwise_conv3d.1} parent=0
    _
  %s6 = ssub.s32 1, %s4
  %s7 = scalar_select 0, %s6, %s4
  $region1: #{pointwise_conv3d.1} parent=0
    #allocation2 [shape = 'u8[196608]{0}', space=vmem, size = 0x30000, scoped, tag = 'input window, operand 2']
    loop: start=0, step=1, limit=6
    $region2: #{pointwise_conv3d.1} parent=1 // loop_pre_header
      _
    $region3: #{pointwise_conv3d.1} parent=1 // loop_header
      %s9 = sphi 0, %s13
      %p10 = scmp.ge.s32.totalorder %s9, 6
      %s16 = sphi 0, %s28
      %s17 = sphi 0, %s24
      %s18 = sphi 0, %s16
      %s19 = sphi 0, %s17
      %s20 = sphi 0, %s18
      %s21 = sphi 0, %s19
      %s29 = sphi 0, %s29
      %s31 = sphi 0, %s29
      %s32 = sphi 0, %s31
      %s46 = sphi 0, %s32
      %s50 = sphi 0, %s50
      %s52 = sphi 0, %s50
      %s53 = sphi 0, %s52
      %s67 = sphi 0, %s53
      %s75 = sphi 0, %s77
      %s78 = sphi 0, %s75
      %s79 = sphi 0, %s78
      %s95 = sphi 0, %s79
      %s103 = sphi 0, %s105
      %s106 = sphi 0, %s103
      %s107 = sphi 0, %s106
      %s123 = sphi 0, %s107
    $region4: #{pointwise_conv3d.1} parent=1 // loop_header_branch
      %12 = sbr.rel (%p10) target = $region8
    $region5: #{pointwise_conv3d.1} parent=1 // loop_body
      %s14 = ssub.s32 %s9, 1
      %s15 = ssub.s32 %s9, 2
      %s22 = sadd.s32 1, %s17
      %p23 = scmp.ge.s32.totalorder %s22, 4
      %s24 = scalar_select %p23, 0, %s22
      %s25 = sadd.s32 1, %s16
      %s26 = scalar_select %p23, %s25, %s16
      %p27 = scmp.ge.s32.totalorder %s26, 1
      %s28 = scalar_select %p27, 0, %s26
      %s30 = sadd.s32 %s29, 1
      %p33 = scmp.eq.s32.totalorder %s9, 3
      %p34 = scmp.ne.s32.totalorder %s29, %s31
      %p35 = scmp.eq.s32.totalorder %s9, 0
      %p36 = por %p34, %p35
      %p37 = scmp.ne.s32.totalorder %s29, %s31
      %p38 = scmp.eq.s32.totalorder %s14, 3
      %p39 = por %p37, %p38
      %p40 = scmp.ne.s32.totalorder %s31, %s32
      %p41 = scmp.eq.s32.totalorder %s14, 0
      %p42 = por %p40, %p41
      %p43 = scmp.ne.s32.totalorder %s31, %s32
      %p44 = scmp.eq.s32.totalorder %s15, 3
      %p45 = por %p43, %p44
      %p47 = scmp.ne.s32.totalorder %s32, %s46
      %p48 = scmp.eq.s32.totalorder %s15, 0
      %p49 = por %p47, %p48
      %s51 = sadd.s32 %s50, 1
      %p54 = scmp.eq.s32.totalorder %s9, 3
      %p55 = scmp.ne.s32.totalorder %s50, %s52
      %p56 = scmp.eq.s32.totalorder %s9, 0
      %p57 = por %p55, %p56
      %p58 = scmp.ne.s32.totalorder %s50, %s52
      %p59 = scmp.eq.s32.totalorder %s14, 3
      %p60 = por %p58, %p59
      %p61 = scmp.ne.s32.totalorder %s52, %s53
      %p62 = scmp.eq.s32.totalorder %s14, 0
      %p63 = por %p61, %p62
      %p64 = scmp.ne.s32.totalorder %s52, %s53
      %p65 = scmp.eq.s32.totalorder %s15, 3
      %p66 = por %p64, %p65
      %p68 = scmp.ne.s32.totalorder %s53, %s67
      %p69 = scmp.eq.s32.totalorder %s15, 0
      %p70 = por %p68, %p69
      %s71 = ssub.s32 %s16, %s28
      %s72 = ssub.s32 %s17, %s24
      %s73 = sor.u32 %s71, %s72
      %p74 = scmp.eq.s32.totalorder %s73, 0
      %s76 = sadd.s32 %s75, 1
      %s77 = scalar_select %p74, %s75, %s76
      %p80 = pneg %p74
      %p81 = scmp.eq.s32.totalorder %s9, 3
      %p82 = por %p80, %p81
      %p83 = scmp.ne.s32.totalorder %s75, %s78
      %p84 = scmp.eq.s32.totalorder %s9, 0
      %p85 = por %p83, %p84
      %p86 = scmp.ne.s32.totalorder %s75, %s78
      %p87 = scmp.eq.s32.totalorder %s14, 3
      %p88 = por %p86, %p87
      %p89 = scmp.ne.s32.totalorder %s78, %s79
      %p90 = scmp.eq.s32.totalorder %s14, 0
      %p91 = por %p89, %p90
      %p92 = scmp.ne.s32.totalorder %s78, %s79
      %p93 = scmp.eq.s32.totalorder %s15, 3
      %p94 = por %p92, %p93
      %p96 = scmp.ne.s32.totalorder %s79, %s95
      %p97 = scmp.eq.s32.totalorder %s15, 0
      %p98 = por %p96, %p97
      %s99 = ssub.s32 %s16, %s28
      %s100 = ssub.s32 %s17, %s24
      %s101 = sor.u32 %s99, %s100
      %p102 = scmp.eq.s32.totalorder %s101, 0
      %s104 = sadd.s32 %s103, 1
      %s105 = scalar_select %p102, %s103, %s104
      %p108 = pneg %p102
      %p109 = scmp.eq.s32.totalorder %s9, 3
      %p110 = por %p108, %p109
      %p111 = scmp.ne.s32.totalorder %s103, %s106
      %p112 = scmp.eq.s32.totalorder %s9, 0
      %p113 = por %p111, %p112
      %p114 = scmp.ne.s32.totalorder %s103, %s106
      %p115 = scmp.eq.s32.totalorder %s14, 3
      %p116 = por %p114, %p115
      %p117 = scmp.ne.s32.totalorder %s106, %s107
      %p118 = scmp.eq.s32.totalorder %s14, 0
      %p119 = por %p117, %p118
      %p120 = scmp.ne.s32.totalorder %s106, %s107
      %p121 = scmp.eq.s32.totalorder %s15, 3
      %p122 = por %p120, %p121
      %p124 = scmp.ne.s32.totalorder %s107, %s123
      %p125 = scmp.eq.s32.totalorder %s15, 0
      %p126 = por %p124, %p125
      %p127 = scmp.le.s32.totalorder 1, %s9
      %p128 = scmp.lt.s32.totalorder %s9, 5
      %p129 = pnand %p127, %p128
      %p130 = pneg %p129
      // Predicated region
      $region9: #{pointwise_conv3d.1} parent=5 // pred_check
        _
      $region10: #{pointwise_conv3d.1} parent=5 // pred_check_branch
        %132 = sbr.rel (%p129) target = $region12
      $region11: #{pointwise_conv3d.1} parent=5 // pred_region
        %s133 = ssub.s32 %s9, 1
        // Predicated region
        $region13: #{pointwise_conv3d.1} parent=11 // pred_check
          %p134 = pneg %p42
        $region14: #{pointwise_conv3d.1} parent=11 // pred_check_branch
          %136 = sbr.rel (%p134) target = $region16
        $region15: #{pointwise_conv3d.1} parent=11 // pred_region
          _
        $region16: #{pointwise_conv3d.1} parent=11 // pred_fallthru
          _
        // Predicated region
        $region17: #{pointwise_conv3d.1} parent=11 // pred_check
          %p137 = pneg %p63
        $region18: #{pointwise_conv3d.1} parent=11 // pred_check_branch
          %139 = sbr.rel (%p137) target = $region20
        $region19: #{pointwise_conv3d.1} parent=11 // pred_region
          _
        $region20: #{pointwise_conv3d.1} parent=11 // pred_fallthru
          _
      $region12: #{pointwise_conv3d.1} parent=5 // pred_fallthru
        _
      %p140 = scmp.lt.s32.totalorder %s9, 4
      // Predicated region
      $region21: #{pointwise_conv3d.1} parent=5 // pred_check
        %p141 = pneg %p140
      $region22: #{pointwise_conv3d.1} parent=5 // pred_check_branch
        %143 = sbr.rel (%p141) target = $region24
      $region23: #{pointwise_conv3d.1} parent=5 // pred_region
        // Predicated region
        $region25: #{pointwise_conv3d.1} parent=23 // pred_check
          %p144 = pneg %p85
        $region26: #{pointwise_conv3d.1} parent=23 // pred_check_branch
          %146 = sbr.rel (%p144) target = $region28
        $region27: #{pointwise_conv3d.1} parent=23 // pred_region
          %s147 = sand.u32 %s75, 1
          %s148 = sand.u32 %s75, 1
          %s149 = smul.addr %s148, 192
          %s150 = scalar_lea.vmem [#allocation2], %s149
          %s151 = smul.u32 8, %s17
          %s152 = smul.addr %s16, 96
          %s153 = sadd.s32 %s151, %s152
          %s154 = smul.addr %s153, 8
          %s155 = scalar_lea.vmem %s2, %s154
          // Predicated region
          $region29: #{pointwise_conv3d.1} parent=27 // pred_check
            _
          $region30: #{pointwise_conv3d.1} parent=27 // pred_check_branch
            %157 = sbr.rel (0) target = $region32
          $region31: #{pointwise_conv3d.1} parent=27 // pred_region
            // Predicated region
            $region33: #{pointwise_conv3d.1} parent=31 // pred_check
              _
            $region34: #{pointwise_conv3d.1} parent=31 // pred_check_branch
              %159 = sbr.rel (0) target = $region36
            $region35: #{pointwise_conv3d.1} parent=31 // pred_region
              loop: start=0, step=1, limit=1
              $region37: #{pointwise_conv3d.1} parent=35 // loop_pre_header
                _
              $region38: #{pointwise_conv3d.1} parent=35 // loop_header
                %s161 = sphi 0, %s165
                %p162 = scmp.ge.s32.totalorder %s161, 1
                %s166 = sphi %s155, %s155
                %s167 = sphi %s150, %s150
              $region39: #{pointwise_conv3d.1} parent=35 // loop_header_branch
                %164 = sbr.rel (%p162) target = $region43
              $region40: #{pointwise_conv3d.1} parent=35 // loop_body
                %v168 = vld [vmem:[%s166] sm:$0xff]
                %169 = vst [vmem:[%s167] sm:$0xff] %v168
                %v170 = vld [vmem:[%s166 + $0x8] sm:$0xff]
                %171 = vst [vmem:[%s167 + $0x8] sm:$0xff] %v170
                %v172 = vld [vmem:[%s166 + $0x10] sm:$0xff]
                %173 = vst [vmem:[%s167 + $0x10] sm:$0xff] %v172
                %v174 = vld [vmem:[%s166 + $0x18] sm:$0xff]
                %175 = vst [vmem:[%s167 + $0x18] sm:$0xff] %v174
                %v176 = vld [vmem:[%s166 + $0x20] sm:$0xff]
                %177 = vst [vmem:[%s167 + $0x20] sm:$0xff] %v176
                %v178 = vld [vmem:[%s166 + $0x28] sm:$0xff]
                %179 = vst [vmem:[%s167 + $0x28] sm:$0xff] %v178
                %v180 = vld [vmem:[%s166 + $0x30] sm:$0xff]
                %181 = vst [vmem:[%s167 + $0x30] sm:$0xff] %v180
                %v182 = vld [vmem:[%s166 + $0x38] sm:$0xff]
                %183 = vst [vmem:[%s167 + $0x38] sm:$0xff] %v182
                %v184 = vld [vmem:[%s166 + $0x100] sm:$0xff]
                %185 = vst [vmem:[%s167 + $0x40] sm:$0xff] %v184
                %v186 = vld [vmem:[%s166 + $0x108] sm:$0xff]
                %187 = vst [vmem:[%s167 + $0x48] sm:$0xff] %v186
                %v188 = vld [vmem:[%s166 + $0x110] sm:$0xff]
                %189 = vst [vmem:[%s167 + $0x50] sm:$0xff] %v188
                %v190 = vld [vmem:[%s166 + $0x118] sm:$0xff]
                %191 = vst [vmem:[%s167 + $0x58] sm:$0xff] %v190
                %v192 = vld [vmem:[%s166 + $0x120] sm:$0xff]
                %193 = vst [vmem:[%s167 + $0x60] sm:$0xff] %v192
                %v194 = vld [vmem:[%s166 + $0x128] sm:$0xff]
                %195 = vst [vmem:[%s167 + $0x68] sm:$0xff] %v194
                %v196 = vld [vmem:[%s166 + $0x130] sm:$0xff]
                %197 = vst [vmem:[%s167 + $0x70] sm:$0xff] %v196
                %v198 = vld [vmem:[%s166 + $0x138] sm:$0xff]
                %199 = vst [vmem:[%s167 + $0x78] sm:$0xff] %v198
                %v200 = vld [vmem:[%s166 + $0x200] sm:$0xff]
                %201 = vst [vmem:[%s167 + $0x80] sm:$0xff] %v200
                %v202 = vld [vmem:[%s166 + $0x208] sm:$0xff]
                %203 = vst [vmem:[%s167 + $0x88] sm:$0xff] %v202
                %v204 = vld [vmem:[%s166 + $0x210] sm:$0xff]
                %205 = vst [vmem:[%s167 + $0x90] sm:$0xff] %v204
                %v206 = vld [vmem:[%s166 + $0x218] sm:$0xff]
                %207 = vst [vmem:[%s167 + $0x98] sm:$0xff] %v206
                %v208 = vld [vmem:[%s166 + $0x220] sm:$0xff]
                %209 = vst [vmem:[%s167 + $0xa0] sm:$0xff] %v208
                %v210 = vld [vmem:[%s166 + $0x228] sm:$0xff]
                %211 = vst [vmem:[%s167 + $0xa8] sm:$0xff] %v210
                %v212 = vld [vmem:[%s166 + $0x230] sm:$0xff]
                %213 = vst [vmem:[%s167 + $0xb0] sm:$0xff] %v212
                %v214 = vld [vmem:[%s166 + $0x238] sm:$0xff]
                %215 = vst [vmem:[%s167 + $0xb8] sm:$0xff] %v214
              $region41: #{pointwise_conv3d.1} parent=35 // loop_footer
                %s165 = sadd.s32 1, %s161
              $region42: #{pointwise_conv3d.1} parent=35 // loop_footer_branch
                %160 = sbr.rel target = $region38
              $region43: #{pointwise_conv3d.1} parent=35 // loop_exit
                _
            $region36: #{pointwise_conv3d.1} parent=31 // pred_fallthru
              _
            // Predicated region
            $region44: #{pointwise_conv3d.1} parent=31 // pred_check
              _
            $region45: #{pointwise_conv3d.1} parent=31 // pred_check_branch
              %217 = sbr.rel target = $region47
            $region46: #{pointwise_conv3d.1} parent=31 // pred_region
              _
            $region47: #{pointwise_conv3d.1} parent=31 // pred_fallthru
              _
          $region32: #{pointwise_conv3d.1} parent=27 // pred_fallthru
            _
          %218 = vnop
        $region28: #{pointwise_conv3d.1} parent=23 // pred_fallthru
          _
      $region24: #{pointwise_conv3d.1} parent=5 // pred_fallthru
        _
      %p219 = scmp.le.s32.totalorder 1, %s9
      %p220 = scmp.lt.s32.totalorder %s9, 5
      %p221 = pnand %p219, %p220
      %p222 = pneg %p221
      // Predicated region
      $region48: #{pointwise_conv3d.1} parent=5 // pred_check
        _
      $region49: #{pointwise_conv3d.1} parent=5 // pred_check_branch
        %224 = sbr.rel (%p221) target = $region51
      $region50: #{pointwise_conv3d.1} parent=5 // pred_region
        %s225 = ssub.s32 %s9, 1
        %s226 = sand.u32 %s78, 1
        %s227 = sand.u32 %s78, 1
        %s228 = smul.addr %s227, 192
        %s229 = scalar_lea.vmem [#allocation2], %s228
        // Predicated region
        $region52: #{pointwise_conv3d.1} parent=50 // pred_check
          %p230 = pneg %p91
        $region53: #{pointwise_conv3d.1} parent=50 // pred_check_branch
          %232 = sbr.rel (%p230) target = $region55
        $region54: #{pointwise_conv3d.1} parent=50 // pred_region
          _
        $region55: #{pointwise_conv3d.1} parent=50 // pred_fallthru
          _
        %p233 = pneg %p42
        %p234 = pneg %p39
        %p235 = pneg %p63
        %p236 = pneg %p60
        %s237 = sand.u32 %s78, 1
        %s238 = sand.u32 %s78, 1
        %s239 = smul.addr %s238, 192
        %s240 = scalar_lea.vmem [#allocation2], %s239
        %p241 = pneg %p91
        %p242 = pneg %p88
        %p243 = pneg %p119
        %p244 = pneg %p116
        %s245 = smul.u32 8, %s19
        %p246 = scmp.lt.s32.totalorder %s18, 0
        %s247 = scalar_select %p246, %s18, 0
        %p248 = scmp.lt.s32.totalorder %s245, 31
        %s249 = scalar_select %p248, %s245, 31
        %s250 = smul.addr %s247, 32
        %s251 = sadd.s32 %s249, %s250
        %s252 = smul.addr %s251, 4
        %s253 = scalar_lea.vmem %s3, %s252
        %s254 = smul.u32 8, %s19
        %s255 = smul.u32 8, %s19
        %p256 = scmp.lt.s32.totalorder %s18, 0
        %s257 = scalar_select %p256, %s18, 0
        %p258 = scmp.lt.s32.totalorder %s255, 31
        %s259 = scalar_select %p258, %s255, 31
        %s260 = smul.addr %s257, 32
        %s261 = sadd.s32 %s259, %s260
        %s262 = smul.addr %s261, 4
        %s263 = scalar_lea.vmem %s3, %s262
        %s264 = smul.u32 8, %s19
        %v265 = vld [vmem:[%s229] sm:$0xff]
        %v266 = vld [vmem:[%s229 + $0x8] sm:$0xff]
        %v267 = vld [vmem:[%s229 + $0x10] sm:$0xff]
        %v268 = vld [vmem:[%s229 + $0x18] sm:$0xff]
        %v269 = vld [vmem:[%s229 + $0x20] sm:$0xff]
        %v270 = vld [vmem:[%s229 + $0x28] sm:$0xff]
        %v271 = vld [vmem:[%s229 + $0x30] sm:$0xff]
        %v272 = vld [vmem:[%s229 + $0x38] sm:$0xff]
        %v273 = vld [vmem:[%s229 + $0x40] sm:$0xff]
        %v274 = vld [vmem:[%s229 + $0x48] sm:$0xff]
        %v275 = vld [vmem:[%s229 + $0x50] sm:$0xff]
        %v276 = vld [vmem:[%s229 + $0x58] sm:$0xff]
        %v277 = vld [vmem:[%s229 + $0x60] sm:$0xff]
        %v278 = vld [vmem:[%s229 + $0x68] sm:$0xff]
        %v279 = vld [vmem:[%s229 + $0x70] sm:$0xff]
        %v280 = vld [vmem:[%s229 + $0x78] sm:$0xff]
        %v281 = vld [vmem:[%s229 + $0x80] sm:$0x1f]
        %v282 = vld [vmem:[%s229 + $0x88] sm:$0x1f]
        %v283 = vld [vmem:[%s229 + $0x90] sm:$0x1f]
        %v284 = vld [vmem:[%s229 + $0x98] sm:$0x1f]
        %v285 = vld [vmem:[%s229 + $0xa0] sm:$0x1f]
        %v286 = vld [vmem:[%s229 + $0xa8] sm:$0x1f]
        %v287 = vld [vmem:[%s229 + $0xb0] sm:$0x1f]
        %v288 = vld [vmem:[%s229 + $0xb8] sm:$0x1f]
        %v289 = vld [vmem:[%s0] sm:$0x7]
        %v290 = vld [vmem:[%s1] sm:$0x7]
        %292 = vset.pattern.permute.xlu0 0
        %293 = vperm.xlu0 %292, %v290
        %v294 = vpop.permute.xlu0 %293
        %vm296 = vcmask 171008
        %v298 = vsel %vm296, %v289, 0
        %vm300 = vcmask 1044480
        %v302 = vsel %vm300, %v281, 0
        %v305 = vsel %vm300, %v282, 0
        %v308 = vsel %vm300, %v283, 0
        %v311 = vsel %vm300, %v284, 0
        %v314 = vsel %vm300, %v285, 0
        %v317 = vsel %vm300, %v286, 0
        %v320 = vsel %vm300, %v287, 0
        %v323 = vsel %vm300, %v288, 0
        %325 = vmatprep.subr.mxu0 0.0
        %326 = vmatpush1.msra.mxu0 0.0
        %327 = vmatprep.subr.mxu0 0.0
        %328 = vmatpush1.msra.mxu0 0.0
        %329 = vmatprep.subr.mxu0 0.0
        %330 = vmatpush1.msra.mxu0 0.0
        %331 = vmatprep.subr.mxu0 0.0
        %332 = vmatpush1.msra.mxu0 0.0
        %333 = vmatprep.subr.mxu0 0.0
        %334 = vmatpush1.msra.mxu0 0.0
        %335 = vmatprep.subr.mxu0 0.0
        %336 = vmatpush1.msra.mxu0 0.0
        %337 = vmatprep.subr.mxu0 0.0
        %338 = vmatpush1.msra.mxu0 0.0
        %339 = vmatprep.subr.mxu0 0.0
        %340 = vmatpush1.msra.mxu0 0.0
        %341 = vmatprep.subr.mxu0 0.0
        %342 = vmatpush1.msra.mxu0 0.0
        %343 = vmatprep.subr.mxu0 0.0
        %344 = vmatpush1.msra.mxu0 0.0
        %345 = vmatprep.subr.mxu0 0.0
        %346 = vmatpush1.msra.mxu0 0.0
        %347 = vmatprep.subr.mxu0 0.0
        %348 = vmatpush1.msra.mxu0 0.0
        %349 = vmatprep.subr.mxu0 0.0
        %350 = vmatpush1.msra.mxu0 0.0
        %351 = vmatprep.subr.mxu0 %v305
        %352 = vmatpush1.msra.mxu0 %v302
        %353 = vmatprep.subr.mxu0 %v274
        %354 = vmatpush1.msra.mxu0 %v273
        %355 = vmatprep.subr.mxu0 %v266
        %356 = vmatpush1.msra.mxu0 %v265
        %357 = vmatprep.subr.mxu0 0.0
        %358 = vmatpush2.msra.mxu0 0.0
        %359 = vmatprep.subr.mxu0 0.0
        %360 = vmatpush2.msra.mxu0 0.0
        %361 = vmatprep.subr.mxu0 0.0
        %362 = vmatpush2.msra.mxu0 0.0
        %363 = vmatprep.subr.mxu0 0.0
        %364 = vmatpush2.msra.mxu0 0.0
        %365 = vmatprep.subr.mxu0 0.0
        %366 = vmatpush2.msra.mxu0 0.0
        %367 = vmatprep.subr.mxu0 0.0
        %368 = vmatpush2.msra.mxu0 0.0
        %369 = vmatprep.subr.mxu0 0.0
        %370 = vmatpush2.msra.mxu0 0.0
        %371 = vmatprep.subr.mxu0 0.0
        %372 = vmatpush2.msra.mxu0 0.0
        %373 = vmatprep.subr.mxu0 0.0
        %374 = vmatpush2.msra.mxu0 0.0
        %375 = vmatprep.subr.mxu0 0.0
        %376 = vmatpush2.msra.mxu0 0.0
        %377 = vmatprep.subr.mxu0 0.0
        %378 = vmatpush2.msra.mxu0 0.0
        %379 = vmatprep.subr.mxu0 0.0
        %380 = vmatpush2.msra.mxu0 0.0
        %381 = vmatprep.subr.mxu0 0.0
        %382 = vmatpush2.msra.mxu0 0.0
        %383 = vmatprep.subr.mxu0 0.0
        %384 = vmatpush2.msra.mxu0 0.0
        %385 = vmatprep.subr.mxu0 0.0
        %386 = vmatpush2.msra.mxu0 0.0
        %387 = vmatprep.subr.mxu0 0.0
        %388 = vmatpush2.msra.mxu0 0.0
        %389 = vmatprep.mubr.f32.mxu0 0.0
        %390 = vmatmul.mubr.f32.gmra.mxu0 %v298
        %v391 = vpop.f32.mrf.mxu0
        %v392 = vadd.f32 %v294, %v391
        %v393 = vpop.f32.mrf.mxu0
        %v394 = vadd.f32 %v294, %v393
        %395 = vdwg.mxu0
        %396 = vmatprep.subr.mxu0 0.0
        %397 = vmatpush1.msra.mxu0 0.0
        %398 = vmatprep.subr.mxu0 0.0
        %399 = vmatpush1.msra.mxu0 0.0
        %400 = vmatprep.subr.mxu0 0.0
        %401 = vmatpush1.msra.mxu0 0.0
        %402 = vmatprep.subr.mxu0 0.0
        %403 = vmatpush1.msra.mxu0 0.0
        %404 = vmatprep.subr.mxu0 0.0
        %405 = vmatpush1.msra.mxu0 0.0
        %406 = vmatprep.subr.mxu0 0.0
        %407 = vmatpush1.msra.mxu0 0.0
        %408 = vmatprep.subr.mxu0 0.0
        %409 = vmatpush1.msra.mxu0 0.0
        %410 = vmatprep.subr.mxu0 0.0
        %411 = vmatpush1.msra.mxu0 0.0
        %412 = vmatprep.subr.mxu0 0.0
        %413 = vmatpush1.msra.mxu0 0.0
        %414 = vmatprep.subr.mxu0 0.0
        %415 = vmatpush1.msra.mxu0 0.0
        %416 = vmatprep.subr.mxu0 0.0
        %417 = vmatpush1.msra.mxu0 0.0
        %418 = vmatprep.subr.mxu0 0.0
        %419 = vmatpush1.msra.mxu0 0.0
        %420 = vmatprep.subr.mxu0 0.0
        %421 = vmatpush1.msra.mxu0 0.0
        %422 = vmatprep.subr.mxu0 %v311
        %423 = vmatpush1.msra.mxu0 %v308
        %424 = vmatprep.subr.mxu0 %v276
        %425 = vmatpush1.msra.mxu0 %v275
        %426 = vmatprep.subr.mxu0 %v268
        %427 = vmatpush1.msra.mxu0 %v267
        %428 = vmatprep.subr.mxu0 0.0
        %429 = vmatpush2.msra.mxu0 0.0
        %430 = vmatprep.subr.mxu0 0.0
        %431 = vmatpush2.msra.mxu0 0.0
        %432 = vmatprep.subr.mxu0 0.0
        %433 = vmatpush2.msra.mxu0 0.0
        %434 = vmatprep.subr.mxu0 0.0
        %435 = vmatpush2.msra.mxu0 0.0
        %436 = vmatprep.subr.mxu0 0.0
        %437 = vmatpush2.msra.mxu0 0.0
        %438 = vmatprep.subr.mxu0 0.0
        %439 = vmatpush2.msra.mxu0 0.0
        %440 = vmatprep.subr.mxu0 0.0
        %441 = vmatpush2.msra.mxu0 0.0
        %442 = vmatprep.subr.mxu0 0.0
        %443 = vmatpush2.msra.mxu0 0.0
        %444 = vmatprep.subr.mxu0 0.0
        %445 = vmatpush2.msra.mxu0 0.0
        %446 = vmatprep.subr.mxu0 0.0
        %447 = vmatpush2.msra.mxu0 0.0
        %448 = vmatprep.subr.mxu0 0.0
        %449 = vmatpush2.msra.mxu0 0.0
        %450 = vmatprep.subr.mxu0 0.0
        %451 = vmatpush2.msra.mxu0 0.0
        %452 = vmatprep.subr.mxu0 0.0
        %453 = vmatpush2.msra.mxu0 0.0
        %454 = vmatprep.subr.mxu0 0.0
        %455 = vmatpush2.msra.mxu0 0.0
        %456 = vmatprep.subr.mxu0 0.0
        %457 = vmatpush2.msra.mxu0 0.0
        %458 = vmatprep.subr.mxu0 0.0
        %459 = vmatpush2.msra.mxu0 0.0
        %460 = vmatprep.mubr.f32.mxu0 0.0
        %461 = vmatmul.mubr.f32.gmra.mxu0 %v298
        %v462 = vpop.f32.mrf.mxu0
        %v463 = vadd.f32 %v294, %v462
        %v464 = vpop.f32.mrf.mxu0
        %v465 = vadd.f32 %v294, %v464
        %466 = vdwg.mxu0
        %467 = vmatprep.subr.mxu0 0.0
        %468 = vmatpush1.msra.mxu0 0.0
        %469 = vmatprep.subr.mxu0 0.0
        %470 = vmatpush1.msra.mxu0 0.0
        %471 = vmatprep.subr.mxu0 0.0
        %472 = vmatpush1.msra.mxu0 0.0
        %473 = vmatprep.subr.mxu0 0.0
        %474 = vmatpush1.msra.mxu0 0.0
        %475 = vmatprep.subr.mxu0 0.0
        %476 = vmatpush1.msra.mxu0 0.0
        %477 = vmatprep.subr.mxu0 0.0
        %478 = vmatpush1.msra.mxu0 0.0
        %479 = vmatprep.subr.mxu0 0.0
        %480 = vmatpush1.msra.mxu0 0.0
        %481 = vmatprep.subr.mxu0 0.0
        %482 = vmatpush1.msra.mxu0 0.0
        %483 = vmatprep.subr.mxu0 0.0
        %484 = vmatpush1.msra.mxu0 0.0
        %485 = vmatprep.subr.mxu0 0.0
        %486 = vmatpush1.msra.mxu0 0.0
        %487 = vmatprep.subr.mxu0 0.0
        %488 = vmatpush1.msra.mxu0 0.0
        %489 = vmatprep.subr.mxu0 0.0
        %490 = vmatpush1.msra.mxu0 0.0
        %491 = vmatprep.subr.mxu0 0.0
        %492 = vmatpush1.msra.mxu0 0.0
        %493 = vmatprep.subr.mxu0 %v317
        %494 = vmatpush1.msra.mxu0 %v314
        %495 = vmatprep.subr.mxu0 %v278
        %496 = vmatpush1.msra.mxu0 %v277
        %497 = vmatprep.subr.mxu0 %v270
        %498 = vmatpush1.msra.mxu0 %v269
        %499 = vmatprep.subr.mxu0 0.0
        %500 = vmatpush2.msra.mxu0 0.0
        %501 = vmatprep.subr.mxu0 0.0
        %502 = vmatpush2.msra.mxu0 0.0
        %503 = vmatprep.subr.mxu0 0.0
        %504 = vmatpush2.msra.mxu0 0.0
        %505 = vmatprep.subr.mxu0 0.0
        %506 = vmatpush2.msra.mxu0 0.0
        %507 = vmatprep.subr.mxu0 0.0
        %508 = vmatpush2.msra.mxu0 0.0
        %509 = vmatprep.subr.mxu0 0.0
        %510 = vmatpush2.msra.mxu0 0.0
        %511 = vmatprep.subr.mxu0 0.0
        %512 = vmatpush2.msra.mxu0 0.0
        %513 = vmatprep.subr.mxu0 0.0
        %514 = vmatpush2.msra.mxu0 0.0
        %515 = vmatprep.subr.mxu0 0.0
        %516 = vmatpush2.msra.mxu0 0.0
        %517 = vmatprep.subr.mxu0 0.0
        %518 = vmatpush2.msra.mxu0 0.0
        %519 = vmatprep.subr.mxu0 0.0
        %520 = vmatpush2.msra.mxu0 0.0
        %521 = vmatprep.subr.mxu0 0.0
        %522 = vmatpush2.msra.mxu0 0.0
        %523 = vmatprep.subr.mxu0 0.0
        %524 = vmatpush2.msra.mxu0 0.0
        %525 = vmatprep.subr.mxu0 0.0
        %526 = vmatpush2.msra.mxu0 0.0
        %527 = vmatprep.subr.mxu0 0.0
        %528 = vmatpush2.msra.mxu0 0.0
        %529 = vmatprep.subr.mxu0 0.0
        %530 = vmatpush2.msra.mxu0 0.0
        %531 = vmatprep.mubr.f32.mxu0 0.0
        %532 = vmatmul.mubr.f32.gmra.mxu0 %v298
        %v533 = vpop.f32.mrf.mxu0
        %v534 = vadd.f32 %v294, %v533
        %v535 = vpop.f32.mrf.mxu0
        %v536 = vadd.f32 %v294, %v535
        %537 = vdwg.mxu0
        %538 = vmatprep.subr.mxu0 0.0
        %539 = vmatpush1.msra.mxu0 0.0
        %540 = vmatprep.subr.mxu0 0.0
        %541 = vmatpush1.msra.mxu0 0.0
        %542 = vmatprep.subr.mxu0 0.0
        %543 = vmatpush1.msra.mxu0 0.0
        %544 = vmatprep.subr.mxu0 0.0
        %545 = vmatpush1.msra.mxu0 0.0
        %546 = vmatprep.subr.mxu0 0.0
        %547 = vmatpush1.msra.mxu0 0.0
        %548 = vmatprep.subr.mxu0 0.0
        %549 = vmatpush1.msra.mxu0 0.0
        %550 = vmatprep.subr.mxu0 0.0
        %551 = vmatpush1.msra.mxu0 0.0
        %552 = vmatprep.subr.mxu0 0.0
        %553 = vmatpush1.msra.mxu0 0.0
        %554 = vmatprep.subr.mxu0 0.0
        %555 = vmatpush1.msra.mxu0 0.0
        %556 = vmatprep.subr.mxu0 0.0
        %557 = vmatpush1.msra.mxu0 0.0
        %558 = vmatprep.subr.mxu0 0.0
        %559 = vmatpush1.msra.mxu0 0.0
        %560 = vmatprep.subr.mxu0 0.0
        %561 = vmatpush1.msra.mxu0 0.0
        %562 = vmatprep.subr.mxu0 0.0
        %563 = vmatpush1.msra.mxu0 0.0
        %564 = vmatprep.subr.mxu0 %v323
        %565 = vmatpush1.msra.mxu0 %v320
        %566 = vmatprep.subr.mxu0 %v280
        %567 = vmatpush1.msra.mxu0 %v279
        %568 = vmatprep.subr.mxu0 %v272
        %569 = vmatpush1.msra.mxu0 %v271
        %570 = vmatprep.subr.mxu0 0.0
        %571 = vmatpush2.msra.mxu0 0.0
        %572 = vmatprep.subr.mxu0 0.0
        %573 = vmatpush2.msra.mxu0 0.0
        %574 = vmatprep.subr.mxu0 0.0
        %575 = vmatpush2.msra.mxu0 0.0
        %576 = vmatprep.subr.mxu0 0.0
        %577 = vmatpush2.msra.mxu0 0.0
        %578 = vmatprep.subr.mxu0 0.0
        %579 = vmatpush2.msra.mxu0 0.0
        %580 = vmatprep.subr.mxu0 0.0
        %581 = vmatpush2.msra.mxu0 0.0
        %582 = vmatprep.subr.mxu0 0.0
        %583 = vmatpush2.msra.mxu0 0.0
        %584 = vmatprep.subr.mxu0 0.0
        %585 = vmatpush2.msra.mxu0 0.0
        %586 = vmatprep.subr.mxu0 0.0
        %587 = vmatpush2.msra.mxu0 0.0
        %588 = vmatprep.subr.mxu0 0.0
        %589 = vmatpush2.msra.mxu0 0.0
        %590 = vmatprep.subr.mxu0 0.0
        %591 = vmatpush2.msra.mxu0 0.0
        %592 = vmatprep.subr.mxu0 0.0
        %593 = vmatpush2.msra.mxu0 0.0
        %594 = vmatprep.subr.mxu0 0.0
        %595 = vmatpush2.msra.mxu0 0.0
        %596 = vmatprep.subr.mxu0 0.0
        %597 = vmatpush2.msra.mxu0 0.0
        %598 = vmatprep.subr.mxu0 0.0
        %599 = vmatpush2.msra.mxu0 0.0
        %600 = vmatprep.subr.mxu0 0.0
        %601 = vmatpush2.msra.mxu0 0.0
        %602 = vmatprep.mubr.f32.mxu0 0.0
        %603 = vmatmul.mubr.f32.gmra.mxu0 %v298
        %v604 = vpop.f32.mrf.mxu0
        %v605 = vadd.f32 %v294, %v604
        %v606 = vpop.f32.mrf.mxu0
        %v607 = vadd.f32 %v294, %v606
        %608 = vdwg.mxu0
        %v617 = vcombine.low %v392, %v394
        %v618 = vcombine.low %v463, %v465
        %v619 = vcombine.low %v534, %v536
        %v620 = vcombine.low %v605, %v607
        %625 = vst [vmem:[%s263] sm:$0x77] %v617
        %626 = vst [vmem:[%s263 + $0x8] sm:$0x77] %v618
        %627 = vst [vmem:[%s263 + $0x10] sm:$0x77] %v619
        %628 = vst [vmem:[%s263 + $0x18] sm:$0x77] %v620
        %s629 = smul.u32 8, %s19
        %p630 = scmp.lt.s32.totalorder %s18, 0
        %s631 = scalar_select %p630, %s18, 0
        %p632 = scmp.lt.s32.totalorder %s629, 31
        %s633 = scalar_select %p632, %s629, 31
        %s634 = smul.addr %s631, 32
        %s635 = sadd.s32 %s633, %s634
        %s636 = smul.addr %s635, 4
        %s637 = scalar_lea.vmem %s3, %s636
        // Predicated region
        $region56: #{pointwise_conv3d.1} parent=50 // pred_check
          %p638 = pneg %p116
        $region57: #{pointwise_conv3d.1} parent=50 // pred_check_branch
          %640 = sbr.rel (%p638) target = $region59
        $region58: #{pointwise_conv3d.1} parent=50 // pred_region
          %s641 = smul.u32 8, %s19
        $region59: #{pointwise_conv3d.1} parent=50 // pred_fallthru
          _
      $region51: #{pointwise_conv3d.1} parent=5 // pred_fallthru
        _
      %p642 = scmp.le.s32.totalorder 2, %s9
      // Predicated region
      $region60: #{pointwise_conv3d.1} parent=5 // pred_check
        %p643 = pneg %p642
      $region61: #{pointwise_conv3d.1} parent=5 // pred_check_branch
        %645 = sbr.rel (%p643) target = $region63
      $region62: #{pointwise_conv3d.1} parent=5 // pred_region
        %s646 = ssub.s32 %s9, 2
        // Predicated region
        $region64: #{pointwise_conv3d.1} parent=62 // pred_check
          %p647 = pneg %p122
        $region65: #{pointwise_conv3d.1} parent=62 // pred_check_branch
          %649 = sbr.rel (%p647) target = $region67
        $region66: #{pointwise_conv3d.1} parent=62 // pred_region
          %s650 = smul.u32 8, %s21
          %p651 = scmp.lt.s32.totalorder %s20, 0
          %s652 = scalar_select %p651, %s20, 0
          %p653 = scmp.lt.s32.totalorder %s650, 31
          %s654 = scalar_select %p653, %s650, 31
          %s655 = smul.addr %s652, 32
          %s656 = sadd.s32 %s654, %s655
          %s657 = smul.addr %s656, 4
          %s658 = scalar_lea.vmem %s3, %s657
        $region67: #{pointwise_conv3d.1} parent=62 // pred_fallthru
          _
      $region63: #{pointwise_conv3d.1} parent=5 // pred_fallthru
        _
    $region6: #{pointwise_conv3d.1} parent=1 // loop_footer
      %s13 = sadd.s32 1, %s9
    $region7: #{pointwise_conv3d.1} parent=1 // loop_footer_branch
      %8 = sbr.rel target = $region3
    $region8: #{pointwise_conv3d.1} parent=1 // loop_exit
      _

</llo_original>
